<compile_context>
chip_gen: v6e
topology: v6e:2x2x1
jax: 0.10.0
libtpu: 0.0.40
codegen_flags: <defaults>
</compile_context>

<pallas_src>
import functools

import jax
import jax.numpy as jnp
from jax.experimental import pallas as pl
from jax.experimental.pallas import tpu as pltpu


def _round_up(x, m):
    return ((x + m - 1) // m) * m


def _reverse_rhs_kernel(t_ref, y_ref, w_ref, b_ref, o_ref, *, mul, fold_mul):
    """One (tb, N) output tile of   mul * tanh(y @ W + (-t) * b).

    W is fully VMEM-resident (constant block index), so the whole K reduction
    is a single MXU dot -- no K grid axis, no accumulator, no init/finalize.
    """
    neg_t = -t_ref[0]                                  # reverse time (SMEM scalar)
    z = jnp.dot(y_ref[...], w_ref[...], preferred_element_type=jnp.float32)
    z = z + neg_t * b_ref[...]
    out = jnp.tanh(z)
    if not fold_mul:                                   # |mul| != 1: epilogue scale
        out = mul * out
    o_ref[...] = out.astype(o_ref.dtype)


def _choose_batch_tiling(B, row_align):
    """Return (tb, Bp).  Small B -> one full-extent tile (no pad, no crop).
    Larger B -> >=2 parallel batch tiles (feeds v7x's 2nd core), tile <= 512."""
    if B <= 2 * row_align:
        return B, B
    tb = min(512, _round_up((B + 1) // 2, row_align))
    Bp = _round_up(B, tb)
    return tb, Bp


def make_reverse_func(w, b, mul=1.0, *, out_dtype=jnp.float32,
                      operand_dtype=jnp.float32):
    """Pallas equivalent of _ReverseFunc(base_func, mul) with
    base_func(t, y) = tanh(y @ W + t * b).  Returned fn(t, y) = mul * base_func(-t, y).

    Parameter prep (mul folding, dtype cast) happens once here; the returned
    forward is jitted so an ODE solver can call it repeatedly with no per-step
    re-prep and (for small batches) no per-step pad/crop ops at all.
    """
    K_in, N_out = w.shape
    assert b.shape == (N_out,)

    mul = float(mul)
    fold_mul = mul in (1.0, -1.0)   # tanh is odd -> fold |mul|==1 into params
    scale = mul if fold_mul else 1.0

    elt = jnp.dtype(operand_dtype).itemsize
    # TODO(synk): if W ever exceeds a conservative VMEM budget, add a K-tiled
    # fallback with an accumulator; ODE RHS widths never get close.
    assert K_in * N_out * elt <= (8 << 20), "W too large for VMEM-resident path"

    # One-time parameter prep (mul fold + operand dtype cast).
    w_p = (scale * w.astype(jnp.float32)).astype(operand_dtype)
    b_p = (scale * b.astype(jnp.float32)).reshape(1, N_out)   # bias kept in f32

    kernel = functools.partial(_reverse_rhs_kernel, mul=mul, fold_mul=fold_mul)
    row_align = 16 if jnp.dtype(operand_dtype) == jnp.dtype(jnp.bfloat16) else 8

    @jax.jit
    def forward(t, y):
        B, K = y.shape
        assert K == K_in, "hidden dim mismatch"
        t_arr = jnp.asarray(t, jnp.float32).reshape((1,))

        tb, Bp = _choose_batch_tiling(B, row_align)
        y_in = y.astype(operand_dtype)
        if Bp != B:   # only when batch must be tiled and doesn't divide evenly
            y_in = jnp.zeros((Bp, K_in), operand_dtype).at[:B, :].set(y_in)

        grid = (Bp // tb,)

        # VMEM budget: double-buffered y/out tiles + resident W + bias, with
        # generous headroom, capped well under v7x's 64 MiB physical VMEM.
        out_elt = jnp.dtype(out_dtype).itemsize
        tile_bytes = (2 * (tb * K_in * elt + tb * N_out * out_elt)
                      + K_in * N_out * elt + N_out * 4)
        vmem_limit = int(min(max(4 * tile_bytes, 8 << 20), 32 << 20))

        out_p = pl.pallas_call(
            kernel,
            out_shape=jax.ShapeDtypeStruct((Bp, N_out), out_dtype),
            grid_spec=pltpu.PrefetchScalarGridSpec(
                num_scalar_prefetch=0,
                grid=grid,
                in_specs=[
                    pl.BlockSpec(memory_space=pltpu.MemorySpace.SMEM),  # t (1,)
                    pl.BlockSpec((tb, K_in), lambda i: (i, 0)),         # y tile
                    pl.BlockSpec((K_in, N_out), lambda i: (0, 0)),      # W (VMEM-resident)
                    pl.BlockSpec((1, N_out), lambda i: (0, 0)),         # b
                ],
                out_specs=pl.BlockSpec((tb, N_out), lambda i: (i, 0)),
            ),
            compiler_params=pltpu.CompilerParams(
                dimension_semantics=("parallel",),
                vmem_limit_bytes=vmem_limit,
            ),
        )(t_arr, y_in, w_p, b_p)

        return out_p if Bp == B else out_p[:B]

    return forward


def reverse_func_reference(t, y, w, b, mul=1.0):
    """Pure-JAX f32 reference of mul * base_func(-t, y)."""
    return mul * jnp.tanh(y @ w + (-t) * b[None, :])


if __name__ == "__main__":
    # TODO(synk): the original module wraps an *arbitrary* base_func; a concrete
    # synthetic base_func (tanh(y @ W + t * b)) is implemented here.
    key = jax.random.PRNGKey(0)
    k_y, k_w, k_b, k_y2 = jax.random.split(key, 4)

    B, H = 8, 32          # batch=8, hidden=32
    mul = -1.0            # torchdiffeq uses mul=-1.0 for reverse-time integration
    t_val = 0.7

    y = jax.random.normal(k_y, (B, H), dtype=jnp.float32)
    W = jax.random.normal(k_w, (H, H), dtype=jnp.float32) * 0.1
    b = jax.random.normal(k_b, (H,), dtype=jnp.float32) * 0.1

    # Case 1: small batch, mul = -1 (fold path, single full-extent block).
    reverse_forward = make_reverse_func(W, b, mul=mul)     # one-time param prep
    out = jax.block_until_ready(reverse_forward(t_val, y))
    ref = reverse_func_reference(jnp.float32(t_val), y, W, b, mul=mul)
    assert out.shape == (B, H)
    assert jnp.allclose(out, ref, atol=5e-3, rtol=5e-3), "mismatch (case 1)"

    # Case 2: larger batch (tiled, >=2 parallel tiles) and non-unit mul
    # (epilogue-scale path).
    B2, mul2, t2 = 48, 0.5, -1.3
    y2 = jax.random.normal(k_y2, (B2, H), dtype=jnp.float32)
    fwd2 = make_reverse_func(W, b, mul=mul2)
    out2 = jax.block_until_ready(fwd2(t2, y2))
    ref2 = reverse_func_reference(jnp.float32(t2), y2, W, b, mul=mul2)
    assert out2.shape == (B2, H)
    assert jnp.allclose(out2, ref2, atol=5e-3, rtol=5e-3), "mismatch (case 2)"

    print("KERNEL_OK")
</pallas_src>

<mosaic_0001>
module attributes {stable_mosaic.version = 11 : i64} {
  func.func @_reverse_rhs_kernel(%arg0: i32, %arg1: memref<1xf32, #tpu.memory_space<smem>>, %arg2: memref<8x32xf32, #tpu.memory_space<vmem>>, %arg3: memref<32x32xf32, #tpu.memory_space<vmem>>, %arg4: memref<1x32xf32, #tpu.memory_space<vmem>>, %arg5: memref<8x32xf32, #tpu.memory_space<vmem>>) attributes {dimension_semantics = [#tpu.dimension_semantics<parallel>], iteration_bounds = array<i64: 1>, scalar_prefetch = 0 : i64, scratch_operands = 0 : i64, tpu.core_type = #tpu.core_type<tc>, window_params = [{transform_indices = @transform_0, window_bounds = array<i64: 1>}, {transform_indices = @transform_1, window_bounds = array<i64: 8, 32>}, {pipeline_mode = #tpu.pipeline_mode<synchronous>, transform_indices = @transform_2, window_bounds = array<i64: 32, 32>}, {pipeline_mode = #tpu.pipeline_mode<synchronous>, transform_indices = @transform_3, window_bounds = array<i64: 1, 32>}, {transform_indices = @transform_4, window_bounds = array<i64: 8, 32>}]} {
    %c0 = arith.constant 0 : index
    %0 = memref.load %arg1[%c0] : memref<1xf32, #tpu.memory_space<smem>>
    %cst = arith.constant 0.000000e+00 : f32
    %1 = arith.subf %cst, %0 : f32
    %c0_0 = arith.constant 0 : index
    %c0_1 = arith.constant 0 : index
    %2 = vector.load %arg2[%c0_0, %c0_1] : memref<8x32xf32, #tpu.memory_space<vmem>>, vector<8x32xf32>
    %c0_2 = arith.constant 0 : index
    %c0_3 = arith.constant 0 : index
    %3 = vector.load %arg3[%c0_2, %c0_3] : memref<32x32xf32, #tpu.memory_space<vmem>>, vector<32x32xf32>
    %cst_4 = arith.constant dense<0.000000e+00> : vector<8x32xf32>
    %4 = tpu.matmul %2, %3, %cst_4 {dimension_numbers = #tpu.dot_dimension_numbers<[1], [0], [0], [1], [0, 0, 1, 1], [], []>} : vector<8x32xf32>, vector<32x32xf32>, vector<8x32xf32> -> vector<8x32xf32>
    %c0_5 = arith.constant 0 : index
    %c0_6 = arith.constant 0 : index
    %5 = vector.load %arg4[%c0_5, %c0_6] : memref<1x32xf32, #tpu.memory_space<vmem>>, vector<1x32xf32>
    %6 = vector.broadcast %1 : f32 to vector<1x32xf32>
    %7 = arith.mulf %6, %5 : vector<1x32xf32>
    %8 = vector.broadcast %7 : vector<1x32xf32> to vector<8x32xf32>
    %9 = arith.addf %4, %8 : vector<8x32xf32>
    %10 = math.tanh %9 : vector<8x32xf32>
    %c0_7 = arith.constant 0 : index
    %c0_8 = arith.constant 0 : index
    %11 = vector.load %arg5[%c0_7, %c0_8] : memref<8x32xf32, #tpu.memory_space<vmem>>, vector<8x32xf32>
    tpu.vector_store %arg5[%c0_7, %c0_8], %10 {strides = array<i32>} : memref<8x32xf32, #tpu.memory_space<vmem>>, vector<8x32xf32>,
    return
  }
  func.func @transform_0(%arg0: i32) -> i32 {
    %c0_i32 = arith.constant 0 : i32
    %c0_i32_0 = arith.constant 0 : i32
    return %c0_i32 : i32
  }
  func.func @transform_1(%arg0: i32) -> (i32, i32) {
    %c0_i32 = arith.constant 0 : i32
    %c0_i32_0 = arith.constant 0 : i32
    return %arg0, %c0_i32 : i32, i32
  }
  func.func @transform_2(%arg0: i32) -> (i32, i32) {
    %c0_i32 = arith.constant 0 : i32
    %c0_i32_0 = arith.constant 0 : i32
    %c0_i32_1 = arith.constant 0 : i32
    return %c0_i32, %c0_i32_0 : i32, i32
  }
  func.func @transform_3(%arg0: i32) -> (i32, i32) {
    %c0_i32 = arith.constant 0 : i32
    %c0_i32_0 = arith.constant 0 : i32
    %c0_i32_1 = arith.constant 0 : i32
    return %c0_i32, %c0_i32_0 : i32, i32
  }
  func.func @transform_4(%arg0: i32) -> (i32, i32) {
    %c0_i32 = arith.constant 0 : i32
    %c0_i32_0 = arith.constant 0 : i32
    return %arg0, %c0_i32 : i32, i32
  }
}

</mosaic_0001>

<llo_original>
// kernel: forward.1
$region0: #{forward.1}
  #allocation0 [shape = 'u32[]', space=smem, size = 0x4, offset = 0x4, fixed_abs, tag = 'smem constant byte address 0x4 - core index']
  #allocation1 [shape = 'u32[144,128]{1,0:T(1,128)}', space=vmem, size = 0x12000, scoped, tag = 'internal scratch']
  #allocation2 [shape = 'f32[1]{0:T(128)S(6)}', space=smem, size = 0x200, scoped, tag = 'scoped memory for forward.1']
  %s0 = inlined_call_operand.<no memory space> [shape: f32[1], index: 0, kind: input, shape index: {}]
  %s1 = inlined_call_operand.hbm [shape: f32[8,32], index: 1, kind: input, shape index: {}]
  %s2 = inlined_call_operand.hbm [shape: f32[32,32], index: 2, kind: input, shape index: {}]
  %s3 = inlined_call_operand.vmem [shape: f32[1,32], index: 3, kind: input, shape index: {}]
  %s4 = inlined_call_operand.hbm [shape: f32[8,32], index: 4, kind: output, shape index: {}]
  %s5 = sld [smem:[#allocation0]]
  $region34: #{forward.1} parent=0
    _
  %s7 = ssub.s32 1, %s5
  %s8 = scalar_select 0, %s7, %s5
  %9 = sst [smem:[#allocation2]] %s0
  $region1: #{forward.1} parent=0
    #allocation3 [shape = 'u8[4096]{0}', space=vmem, size = 0x1000, scoped, tag = 'input window, operand 1, single buffered']
    #allocation4 [shape = 's32[1]{0}', space=sflag, size = 0x4, scoped, tag = 'scoped memory for forward.1']
    #allocation5 [shape = 's32[1]{0}', space=sflag, size = 0x4, scoped, tag = 'scoped memory for forward.1']
    #allocation6 [shape = 'u8[16384]{0}', space=vmem, size = 0x4000, scoped, tag = 'input window, operand 2, single buffered']
    #allocation7 [shape = 's32[1]{0}', space=sflag, size = 0x4, scoped, tag = 'scoped memory for forward.1']
    #allocation8 [shape = 'u8[4096]{0}', space=vmem, size = 0x1000, scoped, tag = 'output window, operand 0, single buffered']
    %10 = vsyncpa [#allocation4], 0
    %11 = vsyncpa [#allocation7], 0
    %12 = vsyncpa [#allocation5], 0
    // Predicated region
    $region2: #{forward.1} parent=1 // pred_check
      _
    $region3: #{forward.1} parent=1 // pred_check_branch
      %14 = sbr.rel (0) target = $region5
    $region4: #{forward.1} parent=1 // pred_region
      _
    $region5: #{forward.1} parent=1 // pred_fallthru
      _
    // Predicated region
    $region6: #{forward.1} parent=1 // pred_check
      _
    $region7: #{forward.1} parent=1 // pred_check_branch
      %16 = sbr.rel (0) target = $region9
    $region8: #{forward.1} parent=1 // pred_region
      %s18 = ssub.s32 128, 128
      %19 = vsyncadd [#allocation4], %s18
      %s21 = sshll.u32 [#allocation3], 4
      %s22 = int_to_ptr.vmem [resolvable:$true] %s21
      %24 = dma.hbm_to_vmem [thread:$0]  %s1, 128, %s22, [#allocation4]
    $region9: #{forward.1} parent=1 // pred_fallthru
      _
    // Predicated region
    $region10: #{forward.1} parent=1 // pred_check
      _
    $region11: #{forward.1} parent=1 // pred_check_branch
      %26 = sbr.rel (0) target = $region13
    $region12: #{forward.1} parent=1 // pred_region
      %s28 = ssub.s32 512, 512
      %29 = vsyncadd [#allocation7], %s28
      %s30 = sshll.u32 [#allocation6], 4
      %s31 = int_to_ptr.vmem [resolvable:$true] %s30
      %36 = dma.hbm_to_vmem [thread:$0]  %s2, 512, %s31, [#allocation7], 128, 128, 8
    $region13: #{forward.1} parent=1 // pred_fallthru
      _
    // Predicated region
    $region14: #{forward.1} parent=1 // pred_check
      _
    $region15: #{forward.1} parent=1 // pred_check_branch
      %38 = sbr.rel (0) target = $region17
    $region16: #{forward.1} parent=1 // pred_region
      _
    $region17: #{forward.1} parent=1 // pred_fallthru
      _
    // Predicated region
    $region18: #{forward.1} parent=1 // pred_check
      _
    $region19: #{forward.1} parent=1 // pred_check_branch
      %40 = sbr.rel (0) target = $region21
    $region20: #{forward.1} parent=1 // pred_region
      %41 = dma.done [#allocation4], 128
    $region21: #{forward.1} parent=1 // pred_fallthru
      _
    // Predicated region
    $region22: #{forward.1} parent=1 // pred_check
      _
    $region23: #{forward.1} parent=1 // pred_check_branch
      %43 = sbr.rel (0) target = $region25
    $region24: #{forward.1} parent=1 // pred_region
      %44 = dma.done [#allocation7], 512
    $region25: #{forward.1} parent=1 // pred_fallthru
      _
    %s45 = sld [smem:[#allocation2]]
    %s46 = ssub.f32 0.0, %s45
    %v47 = vld [vmem:[#allocation3] sm:$0xff]
    %v48 = vld [vmem:[#allocation6] sm:$0xff]
    %v49 = vld [vmem:[#allocation6 + $0x8] sm:$0xff]
    %v50 = vld [vmem:[#allocation6 + $0x10] sm:$0xff]
    %v51 = vld [vmem:[#allocation6 + $0x18] sm:$0xff]
    %v52 = vld [vmem:[%s3] sm:$0x1]
    %v53 = vstv %s46
    %v54 = vmul.f32 %v53, %v52
    %v56 = vlaneseq
    %v57 = vshrl.u32 %v56, 7
    %v58 = vsub.s32 0, %v57
    %v59 = vrot.slane %v54, %v58
    %vm61 = vcmask 261120
    %v63 = vsel %vm61, %v47, 0
    %65 = vmatprep.subr.mxu0 0.0
    %66 = vmatpush1.msra.mxu0 0.0
    %67 = vmatprep.subr.mxu0 0.0
    %68 = vmatpush1.msra.mxu0 0.0
    %69 = vmatprep.subr.mxu0 0.0
    %70 = vmatpush1.msra.mxu0 0.0
    %71 = vmatprep.subr.mxu0 0.0
    %72 = vmatpush1.msra.mxu0 0.0
    %73 = vmatprep.subr.mxu0 0.0
    %74 = vmatpush1.msra.mxu0 0.0
    %75 = vmatprep.subr.mxu0 0.0
    %76 = vmatpush1.msra.mxu0 0.0
    %77 = vmatprep.subr.mxu0 0.0
    %78 = vmatpush1.msra.mxu0 0.0
    %79 = vmatprep.subr.mxu0 0.0
    %80 = vmatpush1.msra.mxu0 0.0
    %81 = vmatprep.subr.mxu0 0.0
    %82 = vmatpush1.msra.mxu0 0.0
    %83 = vmatprep.subr.mxu0 0.0
    %84 = vmatpush1.msra.mxu0 0.0
    %85 = vmatprep.subr.mxu0 0.0
    %86 = vmatpush1.msra.mxu0 0.0
    %87 = vmatprep.subr.mxu0 0.0
    %88 = vmatpush1.msra.mxu0 0.0
    %89 = vmatprep.subr.mxu0 0.0
    %90 = vmatpush1.msra.mxu0 %v51
    %91 = vmatprep.subr.mxu0 0.0
    %92 = vmatpush1.msra.mxu0 %v50
    %93 = vmatprep.subr.mxu0 0.0
    %94 = vmatpush1.msra.mxu0 %v49
    %95 = vmatprep.subr.mxu0 0.0
    %96 = vmatpush1.msra.mxu0 %v48
    %97 = vmatprep.subr.mxu0 0.0
    %98 = vmatpush2.msra.mxu0 0.0
    %99 = vmatprep.subr.mxu0 0.0
    %100 = vmatpush2.msra.mxu0 0.0
    %101 = vmatprep.subr.mxu0 0.0
    %102 = vmatpush2.msra.mxu0 0.0
    %103 = vmatprep.subr.mxu0 0.0
    %104 = vmatpush2.msra.mxu0 0.0
    %105 = vmatprep.subr.mxu0 0.0
    %106 = vmatpush2.msra.mxu0 0.0
    %107 = vmatprep.subr.mxu0 0.0
    %108 = vmatpush2.msra.mxu0 0.0
    %109 = vmatprep.subr.mxu0 0.0
    %110 = vmatpush2.msra.mxu0 0.0
    %111 = vmatprep.subr.mxu0 0.0
    %112 = vmatpush2.msra.mxu0 0.0
    %113 = vmatprep.subr.mxu0 0.0
    %114 = vmatpush2.msra.mxu0 0.0
    %115 = vmatprep.subr.mxu0 0.0
    %116 = vmatpush2.msra.mxu0 0.0
    %117 = vmatprep.subr.mxu0 0.0
    %118 = vmatpush2.msra.mxu0 0.0
    %119 = vmatprep.subr.mxu0 0.0
    %120 = vmatpush2.msra.mxu0 0.0
    %121 = vmatprep.subr.mxu0 0.0
    %122 = vmatpush2.msra.mxu0 0.0
    %123 = vmatprep.subr.mxu0 0.0
    %124 = vmatpush2.msra.mxu0 0.0
    %125 = vmatprep.subr.mxu0 0.0
    %126 = vmatpush2.msra.mxu0 0.0
    %127 = vmatprep.subr.mxu0 0.0
    %128 = vmatpush2.msra.mxu0 0.0
    %129 = vmatprep.mubr.f32.mxu0 0.0
    %130 = vmatmul.mubr.f32.gmra.mxu0 %v63
    %v131 = vpop.f32.mrf.mxu0
    %v132 = vadd.f32 %v59, %v131
    %v133 = vpop.f32.mrf.mxu0
    %134 = vdwg.mxu0
    %v135 = vtanh.pop %v132
    %136 = vst.msk [vmem:[#allocation8] sm:$0xff] %vm61, %v135
    // Predicated region
    $region26: #{forward.1} parent=1 // pred_check
      _
    $region27: #{forward.1} parent=1 // pred_check_branch
      %138 = sbr.rel (0) target = $region29
    $region28: #{forward.1} parent=1 // pred_region
      %s140 = ssub.s32 128, 128
      %141 = vsyncadd [#allocation5], %s140
      %s143 = sshll.u32 [#allocation8], 4
      %s144 = int_to_ptr.vmem [resolvable:$true] %s143
      %146 = dma.vmem_to_hbm [thread:$0]  %s144, 128, %s4, [#allocation5]
    $region29: #{forward.1} parent=1 // pred_fallthru
      _
    // Predicated region
    $region30: #{forward.1} parent=1 // pred_check
      _
    $region31: #{forward.1} parent=1 // pred_check_branch
      %148 = sbr.rel (0) target = $region33
    $region32: #{forward.1} parent=1 // pred_region
      %149 = dma.done [#allocation5], 128
    $region33: #{forward.1} parent=1 // pred_fallthru
      _
    %150 = vsyncpa [#allocation4], 1
    %151 = vsyncpa [#allocation7], 1
    %152 = vsyncpa [#allocation5], 1

</llo_original>
